<compile_context>
chip_gen: v7x
topology: tpu7x:2x2x1
jax: 0.10.0
libtpu: 0.0.40
codegen_flags: <defaults>
</compile_context>

<pallas_src>
from functools import partial

import jax
import jax.numpy as jnp
from jax import lax
from jax.experimental import pallas as pl
from jax.experimental.pallas import tpu as pltpu


def _ge2e_softmax_kernel(N, M, x_ref, w_ref, b_ref, out_ref):
    f32 = jnp.float32
    NM = N * M
    x = x_ref[...]                      # (NM, D) d-vectors, speaker-major rows
    w = w_ref[0, 0]                     # scalar weight (SMEM)
    b = b_ref[0, 0]                     # scalar bias   (SMEM)

    # ---- masks built in-kernel (iota + compare, no int division) -----------
    # onehot[r, k] = 1  iff row r belongs to speaker k  (k*M <= r < (k+1)*M)
    row_id = lax.broadcasted_iota(jnp.int32, (NM, N), 0)
    col_id = lax.broadcasted_iota(jnp.int32, (NM, N), 1)
    onehot_b = (row_id >= col_id * M) & (row_id < (col_id + 1) * M)    # (NM, N) bool
    onehot_f = onehot_b.astype(f32)
    # group[k, r] == onehot[r, k], built directly (no transpose needed)
    g_spk = lax.broadcasted_iota(jnp.int32, (N, NM), 0)
    g_col = lax.broadcasted_iota(jnp.int32, (N, NM), 1)
    group_f = ((g_col >= g_spk * M) & (g_col < (g_spk + 1) * M)).astype(f32)

    # ---- per-speaker sums + the single similarity matmul --------------------
    sums = jnp.dot(group_f, x, preferred_element_type=f32)             # (N, D)  S_k
    raw = jnp.einsum('md,nd->mn', x, sums,
                     preferred_element_type=f32)                       # (NM, N) x_r . S_k

    # ---- reductions issued together so XLU/EUP/MXU can overlap --------------
    xsq = jnp.sum(x * x, axis=-1, keepdims=True)                       # (NM, 1) ||x_r||^2
    raw_own = raw * onehot_f
    d_own = jnp.sum(raw_own, axis=-1, keepdims=True)                   # (NM, 1) x_r . S_spk(r)
    ssq_row = jnp.sum(raw_own, axis=0, keepdims=True)                  # (1, N)  ||S_k||^2

    inv_e = lax.rsqrt(xsq)                                             # 1/||x_r||
    inv_s = lax.rsqrt(ssq_row)                                         # 1/||S_k|| (= 1/(M*||c_k||))

    # Cosine vs. full centroids: the 1/M factors cancel.
    sim_all = raw * inv_e * inv_s                                      # (NM, N)

    # Cosine vs. own leave-one-out centroid e_r = (S_j - x_r)/(M-1):
    # the (M-1) factors cancel as well.
    ssq_own = jnp.sum(onehot_f * ssq_row, axis=-1, keepdims=True)      # (NM, 1) ||S_spk(r)||^2
    esq = ssq_own - 2.0 * d_own + xsq                                  # ||S_j - x_r||^2
    sim_self = (d_own - xsq) * inv_e * lax.rsqrt(esq)                  # (NM, 1)

    # ---- clamp / affine / log-softmax / sum ---------------------------------
    # NOTE: last dim is N (= 4 lanes here) so the tail runs lane-sparse;
    # acceptable at this size -- pad N toward 128 for production speaker counts.
    cos = jnp.where(onehot_b, sim_self, sim_all)                       # (NM, N)
    cos = jnp.maximum(cos, 1e-6)                                       # torch.clamp(min=1e-6)
    scaled = cos * w + b

    own = jnp.maximum(sim_self, 1e-6) * w + b                          # scaled own-column logit
    mx = jnp.max(scaled, axis=-1, keepdims=True)
    lse = mx + jnp.log(jnp.sum(jnp.exp(scaled - mx), axis=-1, keepdims=True))
    loss = lse - own                                                   # (NM, 1)

    out_ref[...] = jnp.sum(loss, keepdims=True)                        # (1, 1)


def ge2e_loss_pallas(dvecs, w, b):
    """dvecs: (N, M, D) float32 (requires M > 1). Returns the scalar GE2E softmax loss."""
    N, M, D = dvecs.shape
    assert M > 1, "GE2E loss needs at least 2 utterances per speaker"
    x = dvecs.reshape(N * M, D).astype(jnp.float32)
    w_arr = jnp.asarray(w, jnp.float32).reshape(1, 1)
    b_arr = jnp.asarray(b, jnp.float32).reshape(1, 1)

    out = pl.pallas_call(
        partial(_ge2e_softmax_kernel, N, M),
        out_shape=jax.ShapeDtypeStruct((1, 1), jnp.float32),
        in_specs=[
            pl.BlockSpec(memory_space=pltpu.MemorySpace.VMEM),   # x  (NM, D)
            pl.BlockSpec(memory_space=pltpu.MemorySpace.SMEM),   # w  (1, 1)
            pl.BlockSpec(memory_space=pltpu.MemorySpace.SMEM),   # b  (1, 1)
        ],
        out_specs=pl.BlockSpec(memory_space=pltpu.MemorySpace.VMEM),
    )(x, w_arr, b_arr)
    return out[0, 0]


def ge2e_loss_reference(dvecs, w, b):
    """Pure-JAX reference mirroring the PyTorch module exactly."""
    N, M, D = dvecs.shape
    centroids = jnp.mean(dvecs, axis=1)                                  # (N, D)
    sums = jnp.sum(dvecs, axis=1)                                        # (N, D)
    excl = (sums[:, None, :] - dvecs) / (M - 1)                          # (N, M, D)
    norm_e = jnp.linalg.norm(dvecs, axis=-1)                             # (N, M)
    norm_c = jnp.linalg.norm(centroids, axis=-1)                         # (N,)
    norm_x = jnp.linalg.norm(excl, axis=-1)                              # (N, M)
    sim_all = jnp.einsum('nmd,kd->nmk', dvecs, centroids) / (
        norm_e[:, :, None] * norm_c[None, None, :])                      # (N, M, N)
    sim_self = jnp.sum(dvecs * excl, axis=-1) / (norm_e * norm_x)        # (N, M)
    eye = jnp.eye(N, dtype=dvecs.dtype)
    cos = sim_all * (1.0 - eye)[:, None, :] + sim_self[:, :, None] * eye[:, None, :]
    cos = jnp.maximum(cos, 1e-6)
    scaled = cos * w + b
    lsm = jax.nn.log_softmax(scaled, axis=-1)
    j_idx = jnp.arange(N)[:, None]
    i_idx = jnp.arange(M)[None, :]
    L = -lsm[j_idx, i_idx, j_idx]
    return jnp.sum(L)


if __name__ == "__main__":
    key = jax.random.PRNGKey(0)
    N, M, D = 4, 6, 32                      # speakers, utterances/speaker, d-vector dim
    dvecs = jax.random.normal(key, (N, M, D), dtype=jnp.float32)

    # Deterministic parameter init, per GE2ELoss.__init__ defaults.
    init_w, init_b = 10.0, -5.0
    # note: torch.clamp(self.w, 1e-6) in forward is not in-place -> no effect.

    out = ge2e_loss_pallas(dvecs, init_w, init_b)
    out = jax.block_until_ready(out)

    ref = ge2e_loss_reference(dvecs, init_w, init_b)
    assert abs(float(out) - float(ref)) < 1e-2 * max(1.0, abs(float(ref))), (
        float(out), float(ref))
    print("KERNEL_OK")
</pallas_src>

<mosaic_0001>
module attributes {stable_mosaic.version = 11 : i64} {
  func.func @_ge2e_softmax_kernel(%arg0: memref<24x32xf32, #tpu.memory_space<vmem>>, %arg1: memref<1x1xf32, #tpu.memory_space<smem>>, %arg2: memref<1x1xf32, #tpu.memory_space<smem>>, %arg3: memref<1x1xf32, #tpu.memory_space<vmem>>) attributes {dimension_semantics = [], scalar_prefetch = 0 : i64, scratch_operands = 0 : i64, tpu.core_type = #tpu.core_type<tc>} {
    %c0 = arith.constant 0 : index
    %c0_0 = arith.constant 0 : index
    %0 = vector.load %arg0[%c0, %c0_0] : memref<24x32xf32, #tpu.memory_space<vmem>>, vector<24x32xf32>
    %c0_1 = arith.constant 0 : index
    %c0_2 = arith.constant 0 : index
    %1 = memref.load %arg1[%c0_1, %c0_2] : memref<1x1xf32, #tpu.memory_space<smem>>
    %c0_3 = arith.constant 0 : index
    %c0_4 = arith.constant 0 : index
    %2 = memref.load %arg2[%c0_3, %c0_4] : memref<1x1xf32, #tpu.memory_space<smem>>
    %3 = tpu.iota {dimensions = array<i32: 0>} : vector<24x4xi32>
    %4 = tpu.iota {dimensions = array<i32: 1>} : vector<24x4xi32>
    %c6_i32 = arith.constant 6 : i32
    %5 = vector.broadcast %c6_i32 : i32 to vector<24x4xi32>
    %6 = arith.muli %4, %5 : vector<24x4xi32>
    %7 = arith.cmpi sge, %3, %6 : vector<24x4xi32>
    %c1_i32 = arith.constant 1 : i32
    %8 = vector.broadcast %c1_i32 : i32 to vector<24x4xi32>
    %9 = arith.addi %4, %8 : vector<24x4xi32>
    %c6_i32_5 = arith.constant 6 : i32
    %10 = vector.broadcast %c6_i32_5 : i32 to vector<24x4xi32>
    %11 = arith.muli %9, %10 : vector<24x4xi32>
    %12 = arith.cmpi slt, %3, %11 : vector<24x4xi32>
    %13 = arith.andi %7, %12 : vector<24x4xi1>
    %14 = arith.extui %13 : vector<24x4xi1> to vector<24x4xi32>
    %15 = arith.sitofp %14 : vector<24x4xi32> to vector<24x4xf32>
    %16 = tpu.iota {dimensions = array<i32: 0>} : vector<4x24xi32>
    %17 = tpu.iota {dimensions = array<i32: 1>} : vector<4x24xi32>
    %c6_i32_6 = arith.constant 6 : i32
    %18 = vector.broadcast %c6_i32_6 : i32 to vector<4x24xi32>
    %19 = arith.muli %16, %18 : vector<4x24xi32>
    %20 = arith.cmpi sge, %17, %19 : vector<4x24xi32>
    %c1_i32_7 = arith.constant 1 : i32
    %21 = vector.broadcast %c1_i32_7 : i32 to vector<4x24xi32>
    %22 = arith.addi %16, %21 : vector<4x24xi32>
    %c6_i32_8 = arith.constant 6 : i32
    %23 = vector.broadcast %c6_i32_8 : i32 to vector<4x24xi32>
    %24 = arith.muli %22, %23 : vector<4x24xi32>
    %25 = arith.cmpi slt, %17, %24 : vector<4x24xi32>
    %26 = arith.andi %20, %25 : vector<4x24xi1>
    %27 = arith.extui %26 : vector<4x24xi1> to vector<4x24xi32>
    %28 = arith.sitofp %27 : vector<4x24xi32> to vector<4x24xf32>
    %cst = arith.constant dense<0.000000e+00> : vector<4x32xf32>
    %29 = tpu.matmul %28, %0, %cst {dimension_numbers = #tpu.dot_dimension_numbers<[1], [0], [0], [1], [0, 0, 1, 1], [], []>} : vector<4x24xf32>, vector<24x32xf32>, vector<4x32xf32> -> vector<4x32xf32>
    "tpu.trace_start"() <{level = 10 : i32, message = "md,nd->mn"}> : () -> ()
    %cst_9 = arith.constant dense<0.000000e+00> : vector<24x4xf32>
    %30 = tpu.matmul %0, %29, %cst_9 {dimension_numbers = #tpu.dot_dimension_numbers<[1], [1], [0], [0], [0, 0, 1, 0], [], []>} : vector<24x32xf32>, vector<4x32xf32>, vector<24x4xf32> -> vector<24x4xf32>
    "tpu.trace_stop"() : () -> ()
    %31 = arith.mulf %0, %0 : vector<24x32xf32>
    %cst_10 = arith.constant dense<0.000000e+00> : vector<24xf32>
    %32 = vector.multi_reduction <add>, %31, %cst_10 [1] : vector<24x32xf32> to vector<24xf32>
    %33 = vector.shape_cast %32 : vector<24xf32> to vector<24x1xf32>
    %34 = arith.mulf %30, %15 : vector<24x4xf32>
    %cst_11 = arith.constant dense<0.000000e+00> : vector<24xf32>
    %35 = vector.multi_reduction <add>, %34, %cst_11 [1] : vector<24x4xf32> to vector<24xf32>
    %36 = vector.shape_cast %35 : vector<24xf32> to vector<24x1xf32>
    %cst_12 = arith.constant dense<0.000000e+00> : vector<4xf32>
    %37 = vector.multi_reduction <add>, %34, %cst_12 [0] : vector<24x4xf32> to vector<4xf32>
    %38 = vector.shape_cast %37 : vector<4xf32> to vector<1x4xf32>
    %39 = math.rsqrt %33 : vector<24x1xf32>
    %40 = math.rsqrt %38 : vector<1x4xf32>
    %41 = vector.broadcast %39 : vector<24x1xf32> to vector<24x4xf32>
    %42 = arith.mulf %30, %41 : vector<24x4xf32>
    %43 = vector.broadcast %40 : vector<1x4xf32> to vector<24x4xf32>
    %44 = arith.mulf %42, %43 : vector<24x4xf32>
    %45 = vector.broadcast %38 : vector<1x4xf32> to vector<24x4xf32>
    %46 = arith.mulf %15, %45 : vector<24x4xf32>
    %cst_13 = arith.constant dense<0.000000e+00> : vector<24xf32>
    %47 = vector.multi_reduction <add>, %46, %cst_13 [1] : vector<24x4xf32> to vector<24xf32>
    %48 = vector.shape_cast %47 : vector<24xf32> to vector<24x1xf32>
    %cst_14 = arith.constant 2.000000e+00 : f32
    %49 = vector.broadcast %cst_14 : f32 to vector<24x1xf32>
    %50 = arith.mulf %49, %36 : vector<24x1xf32>
    %51 = arith.subf %48, %50 : vector<24x1xf32>
    %52 = arith.addf %51, %33 : vector<24x1xf32>
    %53 = arith.subf %36, %33 : vector<24x1xf32>
    %54 = arith.mulf %53, %39 : vector<24x1xf32>
    %55 = math.rsqrt %52 : vector<24x1xf32>
    %56 = arith.mulf %54, %55 : vector<24x1xf32>
    %57 = vector.shape_cast %56 : vector<24x1xf32> to vector<24x1xf32>
    %58 = vector.broadcast %57 : vector<24x1xf32> to vector<24x4xf32>
    %59 = arith.select %13, %58, %44 : vector<24x4xi1>, vector<24x4xf32>
    %cst_15 = arith.constant 9.99999997E-7 : f32
    %60 = vector.broadcast %cst_15 : f32 to vector<24x4xf32>
    %61 = arith.maximumf %59, %60 : vector<24x4xf32>
    %62 = vector.broadcast %1 : f32 to vector<24x4xf32>
    %63 = arith.mulf %61, %62 : vector<24x4xf32>
    %64 = vector.broadcast %2 : f32 to vector<24x4xf32>
    %65 = arith.addf %63, %64 : vector<24x4xf32>
    %cst_16 = arith.constant 9.99999997E-7 : f32
    %66 = vector.broadcast %cst_16 : f32 to vector<24x1xf32>
    %67 = arith.maximumf %56, %66 : vector<24x1xf32>
    %68 = vector.broadcast %1 : f32 to vector<24x1xf32>
    %69 = arith.mulf %67, %68 : vector<24x1xf32>
    %70 = vector.broadcast %2 : f32 to vector<24x1xf32>
    %71 = arith.addf %69, %70 : vector<24x1xf32>
    %cst_17 = arith.constant dense<0xFF800000> : vector<24xf32>
    %72 = vector.multi_reduction <maximumf>, %65, %cst_17 [1] : vector<24x4xf32> to vector<24xf32>
    %73 = vector.shape_cast %72 : vector<24xf32> to vector<24x1xf32>
    %74 = vector.broadcast %73 : vector<24x1xf32> to vector<24x4xf32>
    %75 = arith.subf %65, %74 : vector<24x4xf32>
    %76 = math.exp %75 : vector<24x4xf32>
    %cst_18 = arith.constant dense<0.000000e+00> : vector<24xf32>
    %77 = vector.multi_reduction <add>, %76, %cst_18 [1] : vector<24x4xf32> to vector<24xf32>
    %78 = vector.shape_cast %77 : vector<24xf32> to vector<24x1xf32>
    %79 = math.log %78 : vector<24x1xf32>
    %80 = arith.addf %73, %79 : vector<24x1xf32>
    %81 = arith.subf %80, %71 : vector<24x1xf32>
    %82 = vector.shape_cast %81 : vector<24x1xf32> to vector<1x24x1xf32>
    %cst_19 = arith.constant dense<0.000000e+00> : vector<1xf32>
    %83 = vector.multi_reduction <add>, %82, %cst_19 [1, 2] : vector<1x24x1xf32> to vector<1xf32>
    %84 = vector.shape_cast %83 : vector<1xf32> to vector<1x1x1xf32>
    %85 = vector.extract %84[0, 0, 0] : f32 from vector<1x1x1xf32>
    %86 = vector.broadcast %85 : f32 to vector<1x1xf32>
    %c0_20 = arith.constant 0 : index
    %c0_21 = arith.constant 0 : index
    %87 = vector.load %arg3[%c0_20, %c0_21] : memref<1x1xf32, #tpu.memory_space<vmem>>, vector<1x1xf32>
    tpu.vector_store %arg3[%c0_20, %c0_21], %86 {strides = array<i32>} : memref<1x1xf32, #tpu.memory_space<vmem>>, vector<1x1xf32>,
    return
  }
}

</mosaic_0001>

<llo_original>
// kernel: tpu_custom_call.1
$region0: #{tpu_custom_call.1}
  #allocation0 [shape = 'u32[]', space=smem, size = 0x4, offset = 0x4, fixed_abs, tag = 'smem constant byte address 0x4 - core index']
  #allocation1 [shape = 'u32[144,128]{1,0:T(1,128)}', space=vmem, size = 0x12000, scoped, tag = 'internal scratch']
  #allocation2 [shape = 'f32[1,1]{1,0:T(1,128)S(6)}', space=smem, size = 0x200, scoped, tag = 'scoped memory for tpu_custom_call.1']
  #allocation3 [shape = 'f32[1,1]{1,0:T(1,128)S(6)}', space=smem, size = 0x200, scoped, tag = 'scoped memory for tpu_custom_call.1']
  %s0 = inlined_call_operand.hbm [shape: f32[24,32], index: 0, kind: input, shape index: {}]
  %s1 = inlined_call_operand.<no memory space> [shape: f32[1,1], index: 1, kind: input, shape index: {}]
  %s2 = inlined_call_operand.<no memory space> [shape: f32[1,1], index: 2, kind: input, shape index: {}]
  %s3 = inlined_call_operand.hbm [shape: f32[1,1], index: 3, kind: output, shape index: {}]
  %s4 = sld [smem:[#allocation0]]
  $region26: #{tpu_custom_call.1} parent=0
    _
  %s6 = ssub.s32 1, %s4
  %s7 = scalar_select 0, %s6, %s4
  %8 = sst [smem:[#allocation2]] %s1
  %9 = sst [smem:[#allocation3]] %s2
  $region1: #{tpu_custom_call.1} parent=0
    #allocation4 [shape = 'u8[12288]{0}', space=vmem, size = 0x3000, scoped, tag = 'input window, operand 0, single buffered']
    #allocation5 [shape = 's32[1]{0}', space=sflag, size = 0x4, scoped, tag = 'scoped memory for tpu_custom_call.1']
    #allocation6 [shape = 's32[1]{0}', space=sflag, size = 0x4, scoped, tag = 'scoped memory for tpu_custom_call.1']
    #allocation7 [shape = 'u8[512]{0}', space=vmem, size = 0x400, scoped, tag = 'output window, operand 0, single buffered']
    %10 = vsyncpa [#allocation5], 0
    %11 = vsyncpa [#allocation6], 0
    // Predicated region
    $region2: #{tpu_custom_call.1} parent=1 // pred_check
      _
    $region3: #{tpu_custom_call.1} parent=1 // pred_check_branch
      %13 = sbr.rel (0) target = $region5
    $region4: #{tpu_custom_call.1} parent=1 // pred_region
      %s15 = ssub.s32 384, 384
      %16 = vsyncadd [#allocation5], %s15
      %s17 = sshll.u32 [#allocation4], 4
      %s18 = int_to_ptr.vmem [resolvable:$true] %s17
      %23 = dma.hbm_to_vmem [thread:$0]  %s0, 384, %s18, [#allocation5], 128, 128, 8
    $region5: #{tpu_custom_call.1} parent=1 // pred_fallthru
      _
    // Predicated region
    $region6: #{tpu_custom_call.1} parent=1 // pred_check
      _
    $region7: #{tpu_custom_call.1} parent=1 // pred_check_branch
      %25 = sbr.rel (0) target = $region9
    $region8: #{tpu_custom_call.1} parent=1 // pred_region
      _
    $region9: #{tpu_custom_call.1} parent=1 // pred_fallthru
      _
    // Predicated region
    $region10: #{tpu_custom_call.1} parent=1 // pred_check
      _
    $region11: #{tpu_custom_call.1} parent=1 // pred_check_branch
      %27 = sbr.rel (0) target = $region13
    $region12: #{tpu_custom_call.1} parent=1 // pred_region
      _
    $region13: #{tpu_custom_call.1} parent=1 // pred_fallthru
      _
    // Predicated region
    $region14: #{tpu_custom_call.1} parent=1 // pred_check
      _
    $region15: #{tpu_custom_call.1} parent=1 // pred_check_branch
      %29 = sbr.rel (0) target = $region17
    $region16: #{tpu_custom_call.1} parent=1 // pred_region
      %30 = dma.done [#allocation5], 384
    $region17: #{tpu_custom_call.1} parent=1 // pred_fallthru
      _
    %v31 = vld [vmem:[#allocation4] sm:$0xff]
    %v32 = vld [vmem:[#allocation4 + $0x8] sm:$0xff]
    %v33 = vld [vmem:[#allocation4 + $0x10] sm:$0xff]
    %s34 = sld [smem:[#allocation2]]
    %s35 = sld [smem:[#allocation3]]
    %v36 = vlaneseq
    %v37 = vshrl.u32 %v36, 7
    %v38 = vadd.s32 %v37, 8
    %v39 = vadd.s32 %v37, 16
    %v40 = vlaneseq
    %v41 = vand.u32 %v40, 127
    %v42 = vmul.u32 %v41, 6
    %vm43 = vcmp.ge.s32.totalorder %v37, %v42
    %vm44 = vcmp.ge.s32.totalorder %v38, %v42
    %vm45 = vcmp.ge.s32.totalorder %v39, %v42
    %v46 = vadd.s32 %v41, 1
    %v47 = vmul.u32 %v46, 6
    %vm48 = vcmp.lt.s32.totalorder %v37, %v47
    %vm49 = vcmp.lt.s32.totalorder %v38, %v47
    %vm50 = vcmp.lt.s32.totalorder %v39, %v47
    %vm51 = vmand %vm43, %vm48
    %vm52 = vmand %vm44, %vm49
    %vm53 = vmand %vm45, %vm50
    %v54 = vsel %vm51, 1, 0
    %v55 = vsel %vm52, 1, 0
    %v56 = vsel %vm53, 1, 0
    %v57 = vcvt.s32.f32 %v54
    %v58 = vcvt.s32.f32 %v55
    %v59 = vcvt.s32.f32 %v56
    %v60 = vmul.u32 %v37, 6
    %vm61 = vcmp.ge.s32.totalorder %v41, %v60
    %v62 = vadd.s32 %v37, 1
    %v63 = vmul.u32 %v62, 6
    %vm64 = vcmp.lt.s32.totalorder %v41, %v63
    %vm65 = vmand %vm61, %vm64
    %v66 = vsel %vm65, 1, 0
    %v67 = vcvt.s32.f32 %v66
    %vm68 = vcmask 195584
    %v70 = vsel %vm68, %v67, 0
    %72 = vmatprep.subr.mxu0 0.0
    %73 = vmatpush1.msra.mxu0 %v31
    %74 = vmatprep.subr.mxu0 0.0
    %75 = vmatpush1.msra.mxu0 %v32
    %76 = vmatprep.subr.mxu0 0.0
    %77 = vmatpush1.msra.mxu0 %v33
    %78 = vmatprep.subr.mxu0 0.0
    %79 = vmatpush1.msra.mxu0 0.0
    %80 = vmatprep.subr.mxu0 0.0
    %81 = vmatpush1.msra.mxu0 0.0
    %82 = vmatprep.subr.mxu0 0.0
    %83 = vmatpush1.msra.mxu0 0.0
    %84 = vmatprep.subr.mxu0 0.0
    %85 = vmatpush1.msra.mxu0 0.0
    %86 = vmatprep.subr.mxu0 0.0
    %87 = vmatpush1.msra.mxu0 0.0
    %88 = vmatprep.subr.mxu0 0.0
    %89 = vmatpush1.msra.mxu0 0.0
    %90 = vmatprep.subr.mxu0 0.0
    %91 = vmatpush1.msra.mxu0 0.0
    %92 = vmatprep.subr.mxu0 0.0
    %93 = vmatpush1.msra.mxu0 0.0
    %94 = vmatprep.subr.mxu0 0.0
    %95 = vmatpush1.msra.mxu0 0.0
    %96 = vmatprep.subr.mxu0 0.0
    %97 = vmatpush1.msra.mxu0 0.0
    %98 = vmatprep.subr.mxu0 0.0
    %99 = vmatpush1.msra.mxu0 0.0
    %100 = vmatprep.subr.mxu0 0.0
    %101 = vmatpush1.msra.mxu0 0.0
    %102 = vmatprep.subr.mxu0 0.0
    %103 = vmatpush1.msra.mxu0 0.0
    %104 = vmatprep.subr.mxu0 0.0
    %105 = vmatpush1.msra.mxu0 0.0
    %106 = vmatprep.subr.mxu0 0.0
    %107 = vmatpush1.msra.mxu0 0.0
    %108 = vmatprep.subr.mxu0 0.0
    %109 = vmatpush1.msra.mxu0 0.0
    %110 = vmatprep.subr.mxu0 0.0
    %111 = vmatpush1.msra.mxu0 0.0
    %112 = vmatprep.subr.mxu0 0.0
    %113 = vmatpush1.msra.mxu0 0.0
    %114 = vmatprep.subr.mxu0 0.0
    %115 = vmatpush1.msra.mxu0 0.0
    %116 = vmatprep.subr.mxu0 0.0
    %117 = vmatpush1.msra.mxu0 0.0
    %118 = vmatprep.subr.mxu0 0.0
    %119 = vmatpush1.msra.mxu0 0.0
    %120 = vmatprep.subr.mxu0 0.0
    %121 = vmatpush1.msra.mxu0 0.0
    %122 = vmatprep.subr.mxu0 0.0
    %123 = vmatpush1.msra.mxu0 0.0
    %124 = vmatprep.subr.mxu0 0.0
    %125 = vmatpush1.msra.mxu0 0.0
    %126 = vmatprep.subr.mxu0 0.0
    %127 = vmatpush1.msra.mxu0 0.0
    %128 = vmatprep.subr.mxu0 0.0
    %129 = vmatpush1.msra.mxu0 0.0
    %130 = vmatprep.subr.mxu0 0.0
    %131 = vmatpush1.msra.mxu0 0.0
    %132 = vmatprep.subr.mxu0 0.0
    %133 = vmatpush1.msra.mxu0 0.0
    %134 = vmatprep.subr.mxu0 0.0
    %135 = vmatpush1.msra.mxu0 0.0
    %136 = vmatprep.mubr.f32.mxu0 0.0
    %137 = vmatmul.mubr.f32.gmra.mrb[0].mxu0 %v70
    %v138 = vpop.f32.mrb[0].mxu0
    %v139 = vadd.f32 0.0, %v138
    %v140 = vpop.f32.mrb[0].mxu0
    %141 = vdwg.mxu0
    %vm142 = vcmask 261120
    %v144 = vsel %vm142, %v31, 0
    %v147 = vsel %vm142, %v32, 0
    %v150 = vsel %vm142, %v33, 0
    %v153 = vsel %vm142, %v139, 0
    %155 = vmatprep.subr.mxu0 0.0
    %156 = vmatpush1.xpose.msra.mxu0 %v153
    %157 = vmatprep.subr.mxu0 0.0
    %158 = vmatpush1.xpose.msra.mxu0 0.0
    %159 = vmatprep.subr.mxu0 0.0
    %160 = vmatpush1.xpose.msra.mxu0 0.0
    %161 = vmatprep.subr.mxu0 0.0
    %162 = vmatpush1.xpose.msra.mxu0 0.0
    %163 = vmatprep.subr.mxu0 0.0
    %164 = vmatpush1.xpose.msra.mxu0 0.0
    %165 = vmatprep.subr.mxu0 0.0
    %166 = vmatpush1.xpose.msra.mxu0 0.0
    %167 = vmatprep.subr.mxu0 0.0
    %168 = vmatpush1.xpose.msra.mxu0 0.0
    %169 = vmatprep.subr.mxu0 0.0
    %170 = vmatpush1.xpose.msra.mxu0 0.0
    %171 = vmatprep.subr.mxu0 0.0
    %172 = vmatpush1.xpose.msra.mxu0 0.0
    %173 = vmatprep.subr.mxu0 0.0
    %174 = vmatpush1.xpose.msra.mxu0 0.0
    %175 = vmatprep.subr.mxu0 0.0
    %176 = vmatpush1.xpose.msra.mxu0 0.0
    %177 = vmatprep.subr.mxu0 0.0
    %178 = vmatpush1.xpose.msra.mxu0 0.0
    %179 = vmatprep.subr.mxu0 0.0
    %180 = vmatpush1.xpose.msra.mxu0 0.0
    %181 = vmatprep.subr.mxu0 0.0
    %182 = vmatpush1.xpose.msra.mxu0 0.0
    %183 = vmatprep.subr.mxu0 0.0
    %184 = vmatpush1.xpose.msra.mxu0 0.0
    %185 = vmatprep.subr.mxu0 0.0
    %186 = vmatpush1.xpose.msra.mxu0 0.0
    %187 = vmatprep.subr.mxu0 0.0
    %188 = vmatpush1.xpose.msra.mxu0 0.0
    %189 = vmatprep.subr.mxu0 0.0
    %190 = vmatpush1.xpose.msra.mxu0 0.0
    %191 = vmatprep.subr.mxu0 0.0
    %192 = vmatpush1.xpose.msra.mxu0 0.0
    %193 = vmatprep.subr.mxu0 0.0
    %194 = vmatpush1.xpose.msra.mxu0 0.0
    %195 = vmatprep.subr.mxu0 0.0
    %196 = vmatpush1.xpose.msra.mxu0 0.0
    %197 = vmatprep.subr.mxu0 0.0
    %198 = vmatpush1.xpose.msra.mxu0 0.0
    %199 = vmatprep.subr.mxu0 0.0
    %200 = vmatpush1.xpose.msra.mxu0 0.0
    %201 = vmatprep.subr.mxu0 0.0
    %202 = vmatpush1.xpose.msra.mxu0 0.0
    %203 = vmatprep.subr.mxu0 0.0
    %204 = vmatpush1.xpose.msra.mxu0 0.0
    %205 = vmatprep.subr.mxu0 0.0
    %206 = vmatpush1.xpose.msra.mxu0 0.0
    %207 = vmatprep.subr.mxu0 0.0
    %208 = vmatpush1.xpose.msra.mxu0 0.0
    %209 = vmatprep.subr.mxu0 0.0
    %210 = vmatpush1.xpose.msra.mxu0 0.0
    %211 = vmatprep.subr.mxu0 0.0
    %212 = vmatpush1.xpose.msra.mxu0 0.0
    %213 = vmatprep.subr.mxu0 0.0
    %214 = vmatpush1.xpose.msra.mxu0 0.0
    %215 = vmatprep.subr.mxu0 0.0
    %216 = vmatpush1.xpose.msra.mxu0 0.0
    %217 = vmatprep.subr.mxu0 0.0
    %218 = vmatpush1.xpose.msra.mxu0 0.0
    %219 = vmatprep.mubr.f32.mxu0 0.0
    %220 = vmatmul.mubr.f32.gmra.mrb[0].mxu0 %v144
    %v221 = vpop.f32.mrb[0].mxu0
    %v222 = vadd.f32 0.0, %v221
    %v223 = vpop.f32.mrb[0].mxu0
    %224 = vmatprep.mubr.f32.mxu0 0.0
    %225 = vmatmul.mubr.f32.gmra.mrb[0].mxu0 %v147
    %v226 = vpop.f32.mrb[0].mxu0
    %v227 = vadd.f32 0.0, %v226
    %v228 = vpop.f32.mrb[0].mxu0
    %229 = vmatprep.mubr.f32.mxu0 0.0
    %230 = vmatmul.mubr.f32.gmra.mrb[0].mxu0 %v150
    %v231 = vpop.f32.mrb[0].mxu0
    %v232 = vadd.f32 0.0, %v231
    %v233 = vpop.f32.mrb[0].mxu0
    %234 = vdwg.mxu0
    %v235 = vmul.f32 %v31, %v31
    %v236 = vmul.f32 %v32, %v32
    %v237 = vmul.f32 %v33, %v33
    %v238 = vsel %vm142, %v235, 0.0
    %239 = vadd.xlane.f32.xlu0 %v238
    %v240 = vpop.xlane.xlu0 %239
    %v241 = vsel %vm142, %v236, 0.0
    %242 = vadd.xlane.f32.xlu0 %v241
    %v243 = vpop.xlane.xlu0 %242
    %v244 = vsel %vm142, %v237, 0.0
    %245 = vadd.xlane.f32.xlu0 %v244
    %v246 = vpop.xlane.xlu0 %245
    %v247 = vmul.f32 %v222, %v57
    %v248 = vmul.f32 %v227, %v58
    %v249 = vmul.f32 %v232, %v59
    %vm250 = vcmask 31744
    %v251 = vsel %vm250, %v247, 0.0
    %252 = vadd.xlane.f32.xlu0 %v251
    %v253 = vpop.xlane.xlu0 %252
    %v254 = vsel %vm250, %v248, 0.0
    %255 = vadd.xlane.f32.xlu0 %v254
    %v256 = vpop.xlane.xlu0 %255
    %v257 = vsel %vm250, %v249, 0.0
    %258 = vadd.xlane.f32.xlu0 %v257
    %v259 = vpop.xlane.xlu0 %258
    %v260 = vadd.f32 %v251, %v254
    %v261 = vadd.f32 %v260, %v257
    %v262 = vrot.slane %v261, 4
    %v263 = vadd.f32 %v261, %v262
    %v264 = vrot.slane %v263, 2
    %v265 = vadd.f32 %v263, %v264
    %v266 = vrot.slane %v265, 1
    %v267 = vadd.f32 %v265, %v266
    %v268 = vrsqrt.pop %v240
    %v269 = vrsqrt.pop %v243
    %v270 = vrsqrt.pop %v246
    %v271 = vrsqrt.pop %v267
    %v272 = vmul.f32 %v222, %v268
    %v273 = vmul.f32 %v227, %v269
    %v274 = vmul.f32 %v232, %v270
    %v275 = vmul.f32 %v272, %v271
    %v276 = vmul.f32 %v273, %v271
    %v277 = vmul.f32 %v274, %v271
    %v278 = vmul.f32 %v57, %v267
    %v279 = vmul.f32 %v58, %v267
    %v280 = vmul.f32 %v59, %v267
    %v281 = vsel %vm250, %v278, 0.0
    %282 = vadd.xlane.f32.xlu0 %v281
    %v283 = vpop.xlane.xlu0 %282
    %v284 = vsel %vm250, %v279, 0.0
    %285 = vadd.xlane.f32.xlu0 %v284
    %v286 = vpop.xlane.xlu0 %285
    %v287 = vsel %vm250, %v280, 0.0
    %288 = vadd.xlane.f32.xlu0 %v287
    %v289 = vpop.xlane.xlu0 %288
    %v290 = vmul.f32 %v253, 2.0
    %v291 = vmul.f32 %v256, 2.0
    %v292 = vmul.f32 %v259, 2.0
    %v293 = vsub.f32 %v283, %v290
    %v294 = vsub.f32 %v286, %v291
    %v295 = vsub.f32 %v289, %v292
    %v296 = vadd.f32 %v293, %v240
    %v297 = vadd.f32 %v294, %v243
    %v298 = vadd.f32 %v295, %v246
    %v299 = vsub.f32 %v253, %v240
    %v300 = vsub.f32 %v256, %v243
    %v301 = vsub.f32 %v259, %v246
    %v302 = vmul.f32 %v299, %v268
    %v303 = vmul.f32 %v300, %v269
    %v304 = vmul.f32 %v301, %v270
    %v305 = vrsqrt.pop %v296
    %v306 = vrsqrt.pop %v297
    %v307 = vrsqrt.pop %v298
    %v308 = vmul.f32 %v302, %v305
    %v309 = vmul.f32 %v303, %v306
    %v310 = vmul.f32 %v304, %v307
    %v311 = vsel %vm51, %v308, %v275
    %v312 = vsel %vm52, %v309, %v276
    %v313 = vsel %vm53, %v310, %v277
    %v314 = vmax.f32 %v311, 1e-06
    %v315 = vmax.f32 %v312, 1e-06
    %v316 = vmax.f32 %v313, 1e-06
    %v317 = vstv %s34
    %v318 = vmul.f32 %v314, %v317
    %v319 = vmul.f32 %v315, %v317
    %v320 = vmul.f32 %v316, %v317
    %v321 = vstv %s35
    %v322 = vadd.f32 %v318, %v321
    %v323 = vadd.f32 %v319, %v321
    %v324 = vadd.f32 %v320, %v321
    %v325 = vmax.f32 %v308, 1e-06
    %v326 = vmax.f32 %v309, 1e-06
    %v327 = vmax.f32 %v310, 1e-06
    %v328 = vmul.f32 %v325, %v317
    %v329 = vmul.f32 %v326, %v317
    %v330 = vmul.f32 %v327, %v317
    %v331 = vadd.f32 %v328, %v321
    %v332 = vadd.f32 %v329, %v321
    %v333 = vadd.f32 %v330, %v321
    %v334 = vsel %vm250, %v322, -inf
    %335 = vmax.xlane.f32.xlu0 %v334
    %v336 = vpop.xlane.xlu0 %335
    %v337 = vsel %vm250, %v323, -inf
    %338 = vmax.xlane.f32.xlu0 %v337
    %v339 = vpop.xlane.xlu0 %338
    %v340 = vsel %vm250, %v324, -inf
    %341 = vmax.xlane.f32.xlu0 %v340
    %v342 = vpop.xlane.xlu0 %341
    %v343 = vsub.f32 %v322, %v336
    %v344 = vsub.f32 %v323, %v339
    %v345 = vsub.f32 %v324, %v342
    %v346 = vmul.f32 %v343, 1.442695
    %v347 = vpow.pop %v346
    %v348 = vmul.f32 %v344, 1.442695
    %v349 = vpow.pop %v348
    %v350 = vmul.f32 %v345, 1.442695
    %v351 = vpow.pop %v350
    %v352 = vsel %vm250, %v347, 0.0
    %353 = vadd.xlane.f32.xlu0 %v352
    %v354 = vpop.xlane.xlu0 %353
    %v355 = vsel %vm250, %v349, 0.0
    %356 = vadd.xlane.f32.xlu0 %v355
    %v357 = vpop.xlane.xlu0 %356
    %v358 = vsel %vm250, %v351, 0.0
    %359 = vadd.xlane.f32.xlu0 %v358
    %v360 = vpop.xlane.xlu0 %359
    %v361 = vlog2.pop %v354
    %v362 = vmul.f32 %v361, 0.6931472
    %v363 = vlog2.pop %v357
    %v364 = vmul.f32 %v363, 0.6931472
    %v365 = vlog2.pop %v360
    %v366 = vmul.f32 %v365, 0.6931472
    %v367 = vadd.f32 %v336, %v362
    %v368 = vadd.f32 %v339, %v364
    %v369 = vadd.f32 %v342, %v366
    %v370 = vsub.f32 %v367, %v331
    %v371 = vsub.f32 %v368, %v332
    %v372 = vsub.f32 %v369, %v333
    %vm373 = vcmask 7168
    %v374 = vsel %vm373, %v370, 0.0
    %v375 = vsel %vm373, %v371, 0.0
    %v376 = vadd.f32 %v374, %v375
    %v377 = vsel %vm373, %v372, 0.0
    %v378 = vadd.f32 %v376, %v377
    %379 = vadd.xlane.f32.xlu0 %v378
    %v380 = vpop.xlane.xlu0 %379
    %v381 = vrot.slane %v380, 4
    %v382 = vadd.f32 %v380, %v381
    %v383 = vrot.slane %v382, 2
    %v384 = vadd.f32 %v382, %v383
    %v385 = vrot.slane %v384, 1
    %v386 = vadd.f32 %v384, %v385
    %s387 = vtos %v386
    %v388 = vstv %s387
    %vm389 = vcmask 0
    %390 = vst.msk [vmem:[#allocation7] sm:$0x1] %vm389, %v388
    // Predicated region
    $region18: #{tpu_custom_call.1} parent=1 // pred_check
      _
    $region19: #{tpu_custom_call.1} parent=1 // pred_check_branch
      %392 = sbr.rel (0) target = $region21
    $region20: #{tpu_custom_call.1} parent=1 // pred_region
      %s394 = ssub.s32 16, 16
      %395 = vsyncadd [#allocation6], %s394
      %s397 = sshll.u32 [#allocation7], 4
      %s398 = int_to_ptr.vmem [resolvable:$true] %s397
      %400 = dma.vmem_to_hbm [thread:$0]  %s398, 16, %s3, [#allocation6]
    $region21: #{tpu_custom_call.1} parent=1 // pred_fallthru
      _
    // Predicated region
    $region22: #{tpu_custom_call.1} parent=1 // pred_check
      _
    $region23: #{tpu_custom_call.1} parent=1 // pred_check_branch
      %402 = sbr.rel (0) target = $region25
    $region24: #{tpu_custom_call.1} parent=1 // pred_region
      %403 = dma.done [#allocation6], 16
    $region25: #{tpu_custom_call.1} parent=1 // pred_fallthru
      _
    %404 = vsyncpa [#allocation5], 1
    %405 = vsyncpa [#allocation6], 1

</llo_original>
